<compile_context>
chip_gen: v6e
topology: v6e:2x2x1
jax: 0.10.0
libtpu: 0.0.40
codegen_flags: <defaults>
</compile_context>

<pallas_src>
import functools

import jax
import jax.numpy as jnp
from jax.experimental import pallas as pl
from jax.experimental.pallas import tpu as pltpu


LANE = 128


def _round_up(n, m):
    return pl.cdiv(n, m) * m


# --------------------------------------------------------------------------
# Kernel
# --------------------------------------------------------------------------
def _vae_kernel(x_ref, eps_ref,
                wh_ref, bh_ref, wmv_ref, bmv_ref,
                wd1_ref, bd1_ref, wd2_ref, bd2_ref,
                xhat_ref, muvar_ref, *, z_half, cast_activations):
    x = x_ref[...]

    def mm(a, w_ref):
        # Weights were cast once in prepare_params(); only the (small) per-tile
        # activation operand is cast here, and only for the bf16 path.
        if cast_activations:
            a = a.astype(w_ref.dtype)
        return jnp.dot(a, w_ref[...], preferred_element_type=jnp.float32)

    # ---- encoder ----
    h = jnp.maximum(mm(x, wh_ref) + bh_ref[...], 0.0)          # relu

    # ---- fused mu/var head: one [TB, 2*Z_pad] matmul; lane-aligned split ----
    mv = mm(h, wmv_ref) + bmv_ref[...]
    mu = mv[:, :z_half]            # z_half is a multiple of 128 -> free view
    var = mv[:, z_half:]

    # ---- reparameterization (eps ~ U[0,1), matching torch.rand_like) ----
    z = mu + eps_ref[...] * jnp.exp(var * 0.5)

    # ---- decoder ----
    d1 = jnp.maximum(mm(z, wd1_ref) + bd1_ref[...], 0.0)       # relu
    xhat_ref[...] = mm(d1, wd2_ref) + bd2_ref[...]

    # single lane-dense store for the latent stats ([mu | var], width 2*Z_pad)
    muvar_ref[...] = mv


# --------------------------------------------------------------------------
# One-time parameter preparation (hoisted out of the forward hot path)
# --------------------------------------------------------------------------
def prepare_params(params, *, use_bf16=False):
    """Fuse mu/var heads, zero-pad output dims to 128 lanes, cast weights once.

    Weights are stored [in, out]; biases [1, out]. Padded columns/rows are
    zero, so the real output columns are bit-identical to the unpadded math.
    """
    F, _ = params["wh"].shape
    Z = params["wmu"].shape[1]
    Zp = _round_up(Z, LANE)
    Fp = _round_up(F, LANE)

    def padc(a, to):  # pad output-feature columns with zeros
        return jnp.pad(a, ((0, 0), (0, to - a.shape[1])))

    wmv = jnp.concatenate([padc(params["wmu"], Zp), padc(params["wvar"], Zp)], axis=1)
    bmv = jnp.concatenate([padc(params["bmu"], Zp), padc(params["bvar"], Zp)], axis=1)
    wd1 = jnp.pad(params["wd1"], ((0, Zp - Z), (0, 0)))   # padded z rows are zero
    wd2 = padc(params["wd2"], Fp)
    bd2 = padc(params["bd2"], Fp)

    wdt = jnp.bfloat16 if use_bf16 else jnp.float32
    return dict(
        wh=params["wh"].astype(wdt), bh=params["bh"],
        wmv=wmv.astype(wdt), bmv=bmv,
        wd1=wd1.astype(wdt), bd1=params["bd1"],
        wd2=wd2.astype(wdt), bd2=bd2,
    )


def _pick_tb(batch, tb):
    """Largest multiple-of-8 tile <= tb that divides the batch (avoids padding)."""
    tb = max(8, (min(tb, batch) // 8) * 8)
    t = tb
    while t >= 8:
        if batch % t == 0:
            return t, 0
        t -= 8
    return tb, _round_up(batch, tb) - batch     # last resort: pad the batch


# --------------------------------------------------------------------------
# Wrapper
# --------------------------------------------------------------------------
def vae_forward(x, prep, eps, *, tb=512):
    """Full VAE forward pass, batch-tiled Pallas kernel.

    `prep` comes from prepare_params().  Returns (x_hat, mu, var) exactly as
    the PyTorch module's forward().
    """
    B, F = x.shape
    Z = eps.shape[1]
    H = prep["wh"].shape[1]
    Zp = prep["wd1"].shape[0]
    Fp = prep["wd2"].shape[1]
    use_bf16 = prep["wh"].dtype == jnp.bfloat16

    tb, pad = _pick_tb(B, tb)
    bp = B + pad

    # Keep >= 2 (ideally an even number of) batch tiles so the "parallel"
    # grid axis can feed both TensorCores on v7x.
    while bp // tb < 2 and tb >= 16 and bp % (tb // 2) == 0 and (tb // 2) % 8 == 0:
        tb //= 2

    # eps is tiny (B x Z); pad its lane dim once so the reparameterization is
    # fully lane-aligned.  Padded columns multiply std=exp(0/2)=1 and feed
    # zero rows of wd1, so they never influence real outputs.
    if Z != Zp:
        eps = jnp.pad(eps, ((0, 0), (0, Zp - Z)))
    if pad:
        x = jnp.pad(x, ((0, pad), (0, 0)))
        eps = jnp.pad(eps, ((0, pad), (0, 0)))

    grid = (bp // tb,)

    def tiled(rows, cols):
        return pl.BlockSpec((rows, cols), lambda i: (i, 0))

    def resident(a):
        # Constant index_map -> block fetched once, VMEM-resident across tiles.
        return pl.BlockSpec(a.shape, lambda i: (0, 0))

    # ---- explicit VMEM budget ------------------------------------------------
    def nbytes(a):
        return a.size * a.dtype.itemsize

    weight_bytes = sum(nbytes(v) for v in prep.values())
    act_tile_bytes = tb * (F + Zp + Fp + 2 * Zp) * 4          # x, eps, x_hat, muvar
    need = (2 * weight_bytes                                  # (double-buffered) weights
            + 2 * act_tile_bytes                              # double-buffered act tiles
            + tb * (2 * H + 4 * Zp) * 4                       # h, d1, mv, mu/var/std temps
            + (2 << 20))                                      # compiler scratch headroom
    vmem_limit = int(min(max(need, 32 << 20), 64 << 20))      # safe on v5e/v6e/v7x

    kernel = functools.partial(_vae_kernel, z_half=Zp, cast_activations=use_bf16)

    x_hat, muvar = pl.pallas_call(
        kernel,
        grid=grid,
        in_specs=[
            tiled(tb, F),                       # x
            tiled(tb, Zp),                      # eps (lane-padded)
            resident(prep["wh"]), resident(prep["bh"]),
            resident(prep["wmv"]), resident(prep["bmv"]),
            resident(prep["wd1"]), resident(prep["bd1"]),
            resident(prep["wd2"]), resident(prep["bd2"]),
        ],
        out_specs=(
            tiled(tb, Fp),                      # x_hat (lane-dense)
            tiled(tb, 2 * Zp),                  # [mu | var] (lane-dense)
        ),
        out_shape=(
            jax.ShapeDtypeStruct((bp, Fp), jnp.float32),
            jax.ShapeDtypeStruct((bp, 2 * Zp), jnp.float32),
        ),
        compiler_params=pltpu.CompilerParams(
            dimension_semantics=("parallel",),  # batch tiles independent
            vmem_limit_bytes=vmem_limit,
        ),
    )(x, eps,
      prep["wh"], prep["bh"], prep["wmv"], prep["bmv"],
      prep["wd1"], prep["bd1"], prep["wd2"], prep["bd2"])

    x_hat = x_hat[:B, :F]
    mu = muvar[:B, :Z]
    var = muvar[:B, Zp:Zp + Z]
    return x_hat, mu, var


# --------------------------------------------------------------------------
# Reference / init / test
# --------------------------------------------------------------------------
def init_params(key, input_dim, hidden, zipped):
    """Deterministic synthetic init (torch.nn.Linear-style uniform bounds).

    Weights are stored as [in, out] (i.e. already transposed vs. torch)."""
    ks = jax.random.split(key, 10)

    def lin(kw, kb, fan_in, fan_out):
        bound = 1.0 / jnp.sqrt(fan_in)
        w = jax.random.uniform(kw, (fan_in, fan_out), jnp.float32, -bound, bound)
        b = jax.random.uniform(kb, (1, fan_out), jnp.float32, -bound, bound)
        return w, b

    wh, bh = lin(ks[0], ks[1], input_dim, hidden)
    wmu, bmu = lin(ks[2], ks[3], hidden, zipped)
    wvar, bvar = lin(ks[4], ks[5], hidden, zipped)
    wd1, bd1 = lin(ks[6], ks[7], zipped, hidden)
    wd2, bd2 = lin(ks[8], ks[9], hidden, input_dim)
    return dict(wh=wh, bh=bh, wmu=wmu, bmu=bmu, wvar=wvar, bvar=bvar,
                wd1=wd1, bd1=bd1, wd2=wd2, bd2=bd2)


def vae_forward_ref(x, params, eps):
    """Pure-JAX reference for verification."""
    h = jnp.maximum(x @ params["wh"] + params["bh"], 0.0)
    mu = h @ params["wmu"] + params["bmu"]
    var = h @ params["wvar"] + params["bvar"]
    z = mu + eps * jnp.exp(var * 0.5)
    d1 = jnp.maximum(z @ params["wd1"] + params["bd1"], 0.0)
    x_hat = d1 @ params["wd2"] + params["bd2"]
    return x_hat, mu, var


if __name__ == "__main__":
    key = jax.random.PRNGKey(0)
    k_x, k_p, k_eps = jax.random.split(key, 3)

    B, INPUT, HIDDEN, ZIPPED = 64, 32, 32, 16
    TB = 16  # 4 batch tiles -> exercises the pipelined grid even at toy sizes

    x = jax.random.normal(k_x, (B, INPUT), jnp.float32)
    params = init_params(k_p, INPUT, HIDDEN, ZIPPED)
    # torch.rand_like -> uniform [0, 1); generated once, shared by kernel & ref.
    eps = jax.random.uniform(k_eps, (B, ZIPPED), jnp.float32)

    x_hat_r, mu_r, var_r = vae_forward_ref(x, params, eps)

    # ---- f32 path: exact parity with the PyTorch-equivalent math ----
    prep32 = prepare_params(params, use_bf16=False)
    x_hat, mu, var = jax.block_until_ready(vae_forward(x, prep32, eps, tb=TB))
    assert jnp.allclose(x_hat, x_hat_r, atol=1e-5, rtol=1e-5)
    assert jnp.allclose(mu, mu_r, atol=1e-5, rtol=1e-5)
    assert jnp.allclose(var, var_r, atol=1e-5, rtol=1e-5)

    # ---- bf16-weight path: loose-tolerance sanity check (MXU f32 accumulate) ----
    prep16 = prepare_params(params, use_bf16=True)
    x_hat_b, mu_b, var_b = jax.block_until_ready(vae_forward(x, prep16, eps, tb=TB))
    assert jnp.allclose(x_hat_b, x_hat_r, atol=1e-1, rtol=1e-1)
    assert jnp.allclose(mu_b, mu_r, atol=1e-1, rtol=1e-1)
    assert jnp.allclose(var_b, var_r, atol=1e-1, rtol=1e-1)

    print("KERNEL_OK")
</pallas_src>

<mosaic_0001>
module attributes {stable_mosaic.version = 11 : i64} {
  func.func @_vae_kernel(%arg0: i32, %arg1: memref<16x32xf32, #tpu.memory_space<vmem>>, %arg2: memref<16x128xf32, #tpu.memory_space<vmem>>, %arg3: memref<32x32xf32, #tpu.memory_space<vmem>>, %arg4: memref<1x32xf32, #tpu.memory_space<vmem>>, %arg5: memref<32x256xf32, #tpu.memory_space<vmem>>, %arg6: memref<1x256xf32, #tpu.memory_space<vmem>>, %arg7: memref<128x32xf32, #tpu.memory_space<vmem>>, %arg8: memref<1x32xf32, #tpu.memory_space<vmem>>, %arg9: memref<32x128xf32, #tpu.memory_space<vmem>>, %arg10: memref<1x128xf32, #tpu.memory_space<vmem>>, %arg11: memref<16x128xf32, #tpu.memory_space<vmem>>, %arg12: memref<16x256xf32, #tpu.memory_space<vmem>>) attributes {dimension_semantics = [#tpu.dimension_semantics<parallel>], iteration_bounds = array<i64: 4>, scalar_prefetch = 0 : i64, scratch_operands = 0 : i64, tpu.core_type = #tpu.core_type<tc>, window_params = [{transform_indices = @transform_0, window_bounds = array<i64: 16, 32>}, {transform_indices = @transform_1, window_bounds = array<i64: 16, 128>}, {pipeline_mode = #tpu.pipeline_mode<synchronous>, transform_indices = @transform_2, window_bounds = array<i64: 32, 32>}, {pipeline_mode = #tpu.pipeline_mode<synchronous>, transform_indices = @transform_3, window_bounds = array<i64: 1, 32>}, {pipeline_mode = #tpu.pipeline_mode<synchronous>, transform_indices = @transform_4, window_bounds = array<i64: 32, 256>}, {pipeline_mode = #tpu.pipeline_mode<synchronous>, transform_indices = @transform_5, window_bounds = array<i64: 1, 256>}, {pipeline_mode = #tpu.pipeline_mode<synchronous>, transform_indices = @transform_6, window_bounds = array<i64: 128, 32>}, {pipeline_mode = #tpu.pipeline_mode<synchronous>, transform_indices = @transform_7, window_bounds = array<i64: 1, 32>}, {pipeline_mode = #tpu.pipeline_mode<synchronous>, transform_indices = @transform_8, window_bounds = array<i64: 32, 128>}, {pipeline_mode = #tpu.pipeline_mode<synchronous>, transform_indices = @transform_9, window_bounds = array<i64: 1, 128>}, {transform_indices = @transform_10, window_bounds = array<i64: 16, 128>}, {transform_indices = @transform_11, window_bounds = array<i64: 16, 256>}]} {
    %c0 = arith.constant 0 : index
    %c0_0 = arith.constant 0 : index
    %0 = vector.load %arg1[%c0, %c0_0] : memref<16x32xf32, #tpu.memory_space<vmem>>, vector<16x32xf32>
    %c0_1 = arith.constant 0 : index
    %c0_2 = arith.constant 0 : index
    %1 = vector.load %arg3[%c0_1, %c0_2] : memref<32x32xf32, #tpu.memory_space<vmem>>, vector<32x32xf32>
    %cst = arith.constant dense<0.000000e+00> : vector<16x32xf32>
    %2 = tpu.matmul %0, %1, %cst {dimension_numbers = #tpu.dot_dimension_numbers<[1], [0], [0], [1], [0, 0, 1, 1], [], []>} : vector<16x32xf32>, vector<32x32xf32>, vector<16x32xf32> -> vector<16x32xf32>
    %c0_3 = arith.constant 0 : index
    %c0_4 = arith.constant 0 : index
    %3 = vector.load %arg4[%c0_3, %c0_4] : memref<1x32xf32, #tpu.memory_space<vmem>>, vector<1x32xf32>
    %4 = vector.broadcast %3 : vector<1x32xf32> to vector<16x32xf32>
    %5 = arith.addf %2, %4 : vector<16x32xf32>
    %cst_5 = arith.constant 0.000000e+00 : f32
    %6 = vector.broadcast %cst_5 : f32 to vector<16x32xf32>
    %7 = arith.maximumf %5, %6 : vector<16x32xf32>
    %c0_6 = arith.constant 0 : index
    %c0_7 = arith.constant 0 : index
    %8 = vector.load %arg5[%c0_6, %c0_7] : memref<32x256xf32, #tpu.memory_space<vmem>>, vector<32x256xf32>
    %cst_8 = arith.constant dense<0.000000e+00> : vector<16x256xf32>
    %9 = tpu.matmul %7, %8, %cst_8 {dimension_numbers = #tpu.dot_dimension_numbers<[1], [0], [0], [1], [0, 0, 1, 1], [], []>} : vector<16x32xf32>, vector<32x256xf32>, vector<16x256xf32> -> vector<16x256xf32>
    %c0_9 = arith.constant 0 : index
    %c0_10 = arith.constant 0 : index
    %10 = vector.load %arg6[%c0_9, %c0_10] : memref<1x256xf32, #tpu.memory_space<vmem>>, vector<1x256xf32>
    %11 = vector.broadcast %10 : vector<1x256xf32> to vector<16x256xf32>
    %12 = arith.addf %9, %11 : vector<16x256xf32>
    %13 = vector.extract_strided_slice %12 {offsets = [0, 0], sizes = [16, 128], strides = [1, 1]} : vector<16x256xf32> to vector<16x128xf32>
    %14 = vector.extract_strided_slice %12 {offsets = [0, 128], sizes = [16, 128], strides = [1, 1]} : vector<16x256xf32> to vector<16x128xf32>
    %c0_11 = arith.constant 0 : index
    %c0_12 = arith.constant 0 : index
    %15 = vector.load %arg2[%c0_11, %c0_12] : memref<16x128xf32, #tpu.memory_space<vmem>>, vector<16x128xf32>
    %cst_13 = arith.constant 5.000000e-01 : f32
    %16 = vector.broadcast %cst_13 : f32 to vector<16x128xf32>
    %17 = arith.mulf %14, %16 : vector<16x128xf32>
    %18 = math.exp %17 : vector<16x128xf32>
    %19 = arith.mulf %15, %18 : vector<16x128xf32>
    %20 = arith.addf %13, %19 : vector<16x128xf32>
    %c0_14 = arith.constant 0 : index
    %c0_15 = arith.constant 0 : index
    %21 = vector.load %arg7[%c0_14, %c0_15] : memref<128x32xf32, #tpu.memory_space<vmem>>, vector<128x32xf32>
    %cst_16 = arith.constant dense<0.000000e+00> : vector<16x32xf32>
    %22 = tpu.matmul %20, %21, %cst_16 {dimension_numbers = #tpu.dot_dimension_numbers<[1], [0], [0], [1], [0, 0, 1, 1], [], []>} : vector<16x128xf32>, vector<128x32xf32>, vector<16x32xf32> -> vector<16x32xf32>
    %c0_17 = arith.constant 0 : index
    %c0_18 = arith.constant 0 : index
    %23 = vector.load %arg8[%c0_17, %c0_18] : memref<1x32xf32, #tpu.memory_space<vmem>>, vector<1x32xf32>
    %24 = vector.broadcast %23 : vector<1x32xf32> to vector<16x32xf32>
    %25 = arith.addf %22, %24 : vector<16x32xf32>
    %cst_19 = arith.constant 0.000000e+00 : f32
    %26 = vector.broadcast %cst_19 : f32 to vector<16x32xf32>
    %27 = arith.maximumf %25, %26 : vector<16x32xf32>
    %c0_20 = arith.constant 0 : index
    %c0_21 = arith.constant 0 : index
    %28 = vector.load %arg9[%c0_20, %c0_21] : memref<32x128xf32, #tpu.memory_space<vmem>>, vector<32x128xf32>
    %cst_22 = arith.constant dense<0.000000e+00> : vector<16x128xf32>
    %29 = tpu.matmul %27, %28, %cst_22 {dimension_numbers = #tpu.dot_dimension_numbers<[1], [0], [0], [1], [0, 0, 1, 1], [], []>} : vector<16x32xf32>, vector<32x128xf32>, vector<16x128xf32> -> vector<16x128xf32>
    %c0_23 = arith.constant 0 : index
    %c0_24 = arith.constant 0 : index
    %30 = vector.load %arg10[%c0_23, %c0_24] : memref<1x128xf32, #tpu.memory_space<vmem>>, vector<1x128xf32>
    %31 = vector.broadcast %30 : vector<1x128xf32> to vector<16x128xf32>
    %32 = arith.addf %29, %31 : vector<16x128xf32>
    %c0_25 = arith.constant 0 : index
    %c0_26 = arith.constant 0 : index
    %33 = vector.load %arg11[%c0_25, %c0_26] : memref<16x128xf32, #tpu.memory_space<vmem>>, vector<16x128xf32>
    tpu.vector_store %arg11[%c0_25, %c0_26], %32 {strides = array<i32>} : memref<16x128xf32, #tpu.memory_space<vmem>>, vector<16x128xf32>,
    %c0_27 = arith.constant 0 : index
    %c0_28 = arith.constant 0 : index
    %34 = vector.load %arg12[%c0_27, %c0_28] : memref<16x256xf32, #tpu.memory_space<vmem>>, vector<16x256xf32>
    tpu.vector_store %arg12[%c0_27, %c0_28], %12 {strides = array<i32>} : memref<16x256xf32, #tpu.memory_space<vmem>>, vector<16x256xf32>,
    return
  }
  func.func @transform_0(%arg0: i32) -> (i32, i32) {
    %c0_i32 = arith.constant 0 : i32
    %c0_i32_0 = arith.constant 0 : i32
    return %arg0, %c0_i32 : i32, i32
  }
  func.func @transform_1(%arg0: i32) -> (i32, i32) {
    %c0_i32 = arith.constant 0 : i32
    %c0_i32_0 = arith.constant 0 : i32
    return %arg0, %c0_i32 : i32, i32
  }
  func.func @transform_2(%arg0: i32) -> (i32, i32) {
    %c0_i32 = arith.constant 0 : i32
    %c0_i32_0 = arith.constant 0 : i32
    %c0_i32_1 = arith.constant 0 : i32
    return %c0_i32, %c0_i32_0 : i32, i32
  }
  func.func @transform_3(%arg0: i32) -> (i32, i32) {
    %c0_i32 = arith.constant 0 : i32
    %c0_i32_0 = arith.constant 0 : i32
    %c0_i32_1 = arith.constant 0 : i32
    return %c0_i32, %c0_i32_0 : i32, i32
  }
  func.func @transform_4(%arg0: i32) -> (i32, i32) {
    %c0_i32 = arith.constant 0 : i32
    %c0_i32_0 = arith.constant 0 : i32
    %c0_i32_1 = arith.constant 0 : i32
    return %c0_i32, %c0_i32_0 : i32, i32
  }
  func.func @transform_5(%arg0: i32) -> (i32, i32) {
    %c0_i32 = arith.constant 0 : i32
    %c0_i32_0 = arith.constant 0 : i32
    %c0_i32_1 = arith.constant 0 : i32
    return %c0_i32, %c0_i32_0 : i32, i32
  }
  func.func @transform_6(%arg0: i32) -> (i32, i32) {
    %c0_i32 = arith.constant 0 : i32
    %c0_i32_0 = arith.constant 0 : i32
    %c0_i32_1 = arith.constant 0 : i32
    return %c0_i32, %c0_i32_0 : i32, i32
  }
  func.func @transform_7(%arg0: i32) -> (i32, i32) {
    %c0_i32 = arith.constant 0 : i32
    %c0_i32_0 = arith.constant 0 : i32
    %c0_i32_1 = arith.constant 0 : i32
    return %c0_i32, %c0_i32_0 : i32, i32
  }
  func.func @transform_8(%arg0: i32) -> (i32, i32) {
    %c0_i32 = arith.constant 0 : i32
    %c0_i32_0 = arith.constant 0 : i32
    %c0_i32_1 = arith.constant 0 : i32
    return %c0_i32, %c0_i32_0 : i32, i32
  }
  func.func @transform_9(%arg0: i32) -> (i32, i32) {
    %c0_i32 = arith.constant 0 : i32
    %c0_i32_0 = arith.constant 0 : i32
    %c0_i32_1 = arith.constant 0 : i32
    return %c0_i32, %c0_i32_0 : i32, i32
  }
  func.func @transform_10(%arg0: i32) -> (i32, i32) {
    %c0_i32 = arith.constant 0 : i32
    %c0_i32_0 = arith.constant 0 : i32
    return %arg0, %c0_i32 : i32, i32
  }
  func.func @transform_11(%arg0: i32) -> (i32, i32) {
    %c0_i32 = arith.constant 0 : i32
    %c0_i32_0 = arith.constant 0 : i32
    return %arg0, %c0_i32 : i32, i32
  }
}

</mosaic_0001>

<llo_original>
// kernel: tpu_custom_call.1
$region0: #{tpu_custom_call.1}
  #allocation0 [shape = 'u32[]', space=smem, size = 0x4, offset = 0x4, fixed_abs, tag = 'smem constant byte address 0x4 - core index']
  #allocation1 [shape = 'u32[144,128]{1,0:T(1,128)}', space=vmem, size = 0x12000, scoped, tag = 'internal scratch']
  %s0 = inlined_call_operand.vmem [shape: f32[64,32], index: 0, kind: input, shape index: {}]
  %s1 = inlined_call_operand.vmem [shape: f32[64,128], index: 1, kind: input, shape index: {}]
  %s2 = inlined_call_operand.vmem [shape: f32[32,32], index: 2, kind: input, shape index: {}]
  %s3 = inlined_call_operand.vmem [shape: f32[1,32], index: 3, kind: input, shape index: {}]
  %s4 = inlined_call_operand.vmem [shape: f32[32,256], index: 4, kind: input, shape index: {}]
  %s5 = inlined_call_operand.vmem [shape: f32[1,256], index: 5, kind: input, shape index: {}]
  %s6 = inlined_call_operand.vmem [shape: f32[128,32], index: 6, kind: input, shape index: {}]
  %s7 = inlined_call_operand.vmem [shape: f32[1,32], index: 7, kind: input, shape index: {}]
  %s8 = inlined_call_operand.vmem [shape: f32[32,128], index: 8, kind: input, shape index: {}]
  %s9 = inlined_call_operand.vmem [shape: f32[1,128], index: 9, kind: input, shape index: {}]
  %s10 = inlined_call_operand.hbm [shape: f32[64,128], index: 10, kind: output, shape index: {0}]
  %s11 = inlined_call_operand.hbm [shape: f32[64,256], index: 11, kind: output, shape index: {1}]
  %12 = xla_tuple %s10, %s11
  %s13 = sld [smem:[#allocation0]]
  $region81: #{tpu_custom_call.1} parent=0
    _
  %s15 = ssub.s32 1, %s13
  %s16 = scalar_select 0, %s15, %s13
  $region1: #{tpu_custom_call.1} parent=0
    #allocation2 [shape = 'u8[16384]{0}', space=vmem, size = 0x4000, scoped, tag = 'output window, operand 0']
    #allocation3 [shape = 's32[2]{0}', space=sflag, size = 0x8, scoped, tag = 'scoped memory for tpu_custom_call.1']
    #allocation4 [shape = 'u8[32768]{0}', space=vmem, size = 0x8000, scoped, tag = 'output window, operand 1']
    #allocation5 [shape = 's32[2]{0}', space=sflag, size = 0x8, scoped, tag = 'scoped memory for tpu_custom_call.1']
    %17 = vsyncpa [#allocation3], 0
    %s18 = scalar_lea.sflag [#allocation3], 1
    %19 = vsyncpa %s18, 0
    %20 = vsyncpa [#allocation5], 0
    %s21 = scalar_lea.sflag [#allocation5], 1
    %22 = vsyncpa %s21, 0
    loop: start=0, step=1, limit=6
    $region2: #{tpu_custom_call.1} parent=1 // loop_pre_header
      _
    $region3: #{tpu_custom_call.1} parent=1 // loop_header
      %s24 = sphi 0, %s28
      %p25 = scmp.ge.s32.totalorder %s24, 6
      %s34 = sphi 0, %s36
      %s37 = sphi 0, %s34
      %s38 = sphi 0, %s37
      %s54 = sphi 0, %s38
      %s60 = sphi 0, %s62
      %s63 = sphi 0, %s60
      %s64 = sphi 0, %s63
      %s80 = sphi 0, %s64
      %s84 = sphi 0, %s84
      %s86 = sphi 0, %s84
      %s87 = sphi 0, %s86
      %s101 = sphi 0, %s87
      %s105 = sphi 0, %s105
      %s107 = sphi 0, %s105
      %s108 = sphi 0, %s107
      %s122 = sphi 0, %s108
      %s126 = sphi 0, %s126
      %s128 = sphi 0, %s126
      %s129 = sphi 0, %s128
      %s143 = sphi 0, %s129
      %s147 = sphi 0, %s147
      %s149 = sphi 0, %s147
      %s150 = sphi 0, %s149
      %s164 = sphi 0, %s150
      %s168 = sphi 0, %s168
      %s170 = sphi 0, %s168
      %s171 = sphi 0, %s170
      %s185 = sphi 0, %s171
      %s189 = sphi 0, %s189
      %s191 = sphi 0, %s189
      %s192 = sphi 0, %s191
      %s206 = sphi 0, %s192
      %s210 = sphi 0, %s210
      %s212 = sphi 0, %s210
      %s213 = sphi 0, %s212
      %s227 = sphi 0, %s213
      %s231 = sphi 0, %s231
      %s233 = sphi 0, %s231
      %s234 = sphi 0, %s233
      %s248 = sphi 0, %s234
      %s254 = sphi 0, %s256
      %s257 = sphi 0, %s254
      %s258 = sphi 0, %s257
      %s274 = sphi 0, %s258
      %s280 = sphi 0, %s282
      %s283 = sphi 0, %s280
      %s284 = sphi 0, %s283
      %s300 = sphi 0, %s284
    $region4: #{tpu_custom_call.1} parent=1 // loop_header_branch
      %27 = sbr.rel (%p25) target = $region8
    $region5: #{tpu_custom_call.1} parent=1 // loop_body
      %s29 = ssub.s32 %s24, 1
      %s30 = ssub.s32 %s24, 2
      %s31 = sadd.s32 %s24, 1
      %s32 = ssub.s32 %s24, %s31
      %p33 = scmp.eq.s32.totalorder %s32, 0
      %s35 = sadd.s32 %s34, 1
      %s36 = scalar_select %p33, %s34, %s35
      %p39 = pneg %p33
      %p40 = scmp.eq.s32.totalorder %s24, 3
      %p41 = por %p39, %p40
      %p42 = scmp.ne.s32.totalorder %s34, %s37
      %p43 = scmp.eq.s32.totalorder %s24, 0
      %p44 = por %p42, %p43
      %p45 = scmp.ne.s32.totalorder %s34, %s37
      %p46 = scmp.eq.s32.totalorder %s29, 3
      %p47 = por %p45, %p46
      %p48 = scmp.ne.s32.totalorder %s37, %s38
      %p49 = scmp.eq.s32.totalorder %s29, 0
      %p50 = por %p48, %p49
      %p51 = scmp.ne.s32.totalorder %s37, %s38
      %p52 = scmp.eq.s32.totalorder %s30, 3
      %p53 = por %p51, %p52
      %p55 = scmp.ne.s32.totalorder %s38, %s54
      %p56 = scmp.eq.s32.totalorder %s30, 0
      %p57 = por %p55, %p56
      %s58 = ssub.s32 %s24, %s31
      %p59 = scmp.eq.s32.totalorder %s58, 0
      %s61 = sadd.s32 %s60, 1
      %s62 = scalar_select %p59, %s60, %s61
      %p65 = pneg %p59
      %p66 = scmp.eq.s32.totalorder %s24, 3
      %p67 = por %p65, %p66
      %p68 = scmp.ne.s32.totalorder %s60, %s63
      %p69 = scmp.eq.s32.totalorder %s24, 0
      %p70 = por %p68, %p69
      %p71 = scmp.ne.s32.totalorder %s60, %s63
      %p72 = scmp.eq.s32.totalorder %s29, 3
      %p73 = por %p71, %p72
      %p74 = scmp.ne.s32.totalorder %s63, %s64
      %p75 = scmp.eq.s32.totalorder %s29, 0
      %p76 = por %p74, %p75
      %p77 = scmp.ne.s32.totalorder %s63, %s64
      %p78 = scmp.eq.s32.totalorder %s30, 3
      %p79 = por %p77, %p78
      %p81 = scmp.ne.s32.totalorder %s64, %s80
      %p82 = scmp.eq.s32.totalorder %s30, 0
      %p83 = por %p81, %p82
      %s85 = sadd.s32 %s84, 1
      %p88 = scmp.eq.s32.totalorder %s24, 3
      %p89 = scmp.ne.s32.totalorder %s84, %s86
      %p90 = scmp.eq.s32.totalorder %s24, 0
      %p91 = por %p89, %p90
      %p92 = scmp.ne.s32.totalorder %s84, %s86
      %p93 = scmp.eq.s32.totalorder %s29, 3
      %p94 = por %p92, %p93
      %p95 = scmp.ne.s32.totalorder %s86, %s87
      %p96 = scmp.eq.s32.totalorder %s29, 0
      %p97 = por %p95, %p96
      %p98 = scmp.ne.s32.totalorder %s86, %s87
      %p99 = scmp.eq.s32.totalorder %s30, 3
      %p100 = por %p98, %p99
      %p102 = scmp.ne.s32.totalorder %s87, %s101
      %p103 = scmp.eq.s32.totalorder %s30, 0
      %p104 = por %p102, %p103
      %s106 = sadd.s32 %s105, 1
      %p109 = scmp.eq.s32.totalorder %s24, 3
      %p110 = scmp.ne.s32.totalorder %s105, %s107
      %p111 = scmp.eq.s32.totalorder %s24, 0
      %p112 = por %p110, %p111
      %p113 = scmp.ne.s32.totalorder %s105, %s107
      %p114 = scmp.eq.s32.totalorder %s29, 3
      %p115 = por %p113, %p114
      %p116 = scmp.ne.s32.totalorder %s107, %s108
      %p117 = scmp.eq.s32.totalorder %s29, 0
      %p118 = por %p116, %p117
      %p119 = scmp.ne.s32.totalorder %s107, %s108
      %p120 = scmp.eq.s32.totalorder %s30, 3
      %p121 = por %p119, %p120
      %p123 = scmp.ne.s32.totalorder %s108, %s122
      %p124 = scmp.eq.s32.totalorder %s30, 0
      %p125 = por %p123, %p124
      %s127 = sadd.s32 %s126, 1
      %p130 = scmp.eq.s32.totalorder %s24, 3
      %p131 = scmp.ne.s32.totalorder %s126, %s128
      %p132 = scmp.eq.s32.totalorder %s24, 0
      %p133 = por %p131, %p132
      %p134 = scmp.ne.s32.totalorder %s126, %s128
      %p135 = scmp.eq.s32.totalorder %s29, 3
      %p136 = por %p134, %p135
      %p137 = scmp.ne.s32.totalorder %s128, %s129
      %p138 = scmp.eq.s32.totalorder %s29, 0
      %p139 = por %p137, %p138
      %p140 = scmp.ne.s32.totalorder %s128, %s129
      %p141 = scmp.eq.s32.totalorder %s30, 3
      %p142 = por %p140, %p141
      %p144 = scmp.ne.s32.totalorder %s129, %s143
      %p145 = scmp.eq.s32.totalorder %s30, 0
      %p146 = por %p144, %p145
      %s148 = sadd.s32 %s147, 1
      %p151 = scmp.eq.s32.totalorder %s24, 3
      %p152 = scmp.ne.s32.totalorder %s147, %s149
      %p153 = scmp.eq.s32.totalorder %s24, 0
      %p154 = por %p152, %p153
      %p155 = scmp.ne.s32.totalorder %s147, %s149
      %p156 = scmp.eq.s32.totalorder %s29, 3
      %p157 = por %p155, %p156
      %p158 = scmp.ne.s32.totalorder %s149, %s150
      %p159 = scmp.eq.s32.totalorder %s29, 0
      %p160 = por %p158, %p159
      %p161 = scmp.ne.s32.totalorder %s149, %s150
      %p162 = scmp.eq.s32.totalorder %s30, 3
      %p163 = por %p161, %p162
      %p165 = scmp.ne.s32.totalorder %s150, %s164
      %p166 = scmp.eq.s32.totalorder %s30, 0
      %p167 = por %p165, %p166
      %s169 = sadd.s32 %s168, 1
      %p172 = scmp.eq.s32.totalorder %s24, 3
      %p173 = scmp.ne.s32.totalorder %s168, %s170
      %p174 = scmp.eq.s32.totalorder %s24, 0
      %p175 = por %p173, %p174
      %p176 = scmp.ne.s32.totalorder %s168, %s170
      %p177 = scmp.eq.s32.totalorder %s29, 3
      %p178 = por %p176, %p177
      %p179 = scmp.ne.s32.totalorder %s170, %s171
      %p180 = scmp.eq.s32.totalorder %s29, 0
      %p181 = por %p179, %p180
      %p182 = scmp.ne.s32.totalorder %s170, %s171
      %p183 = scmp.eq.s32.totalorder %s30, 3
      %p184 = por %p182, %p183
      %p186 = scmp.ne.s32.totalorder %s171, %s185
      %p187 = scmp.eq.s32.totalorder %s30, 0
      %p188 = por %p186, %p187
      %s190 = sadd.s32 %s189, 1
      %p193 = scmp.eq.s32.totalorder %s24, 3
      %p194 = scmp.ne.s32.totalorder %s189, %s191
      %p195 = scmp.eq.s32.totalorder %s24, 0
      %p196 = por %p194, %p195
      %p197 = scmp.ne.s32.totalorder %s189, %s191
      %p198 = scmp.eq.s32.totalorder %s29, 3
      %p199 = por %p197, %p198
      %p200 = scmp.ne.s32.totalorder %s191, %s192
      %p201 = scmp.eq.s32.totalorder %s29, 0
      %p202 = por %p200, %p201
      %p203 = scmp.ne.s32.totalorder %s191, %s192
      %p204 = scmp.eq.s32.totalorder %s30, 3
      %p205 = por %p203, %p204
      %p207 = scmp.ne.s32.totalorder %s192, %s206
      %p208 = scmp.eq.s32.totalorder %s30, 0
      %p209 = por %p207, %p208
      %s211 = sadd.s32 %s210, 1
      %p214 = scmp.eq.s32.totalorder %s24, 3
      %p215 = scmp.ne.s32.totalorder %s210, %s212
      %p216 = scmp.eq.s32.totalorder %s24, 0
      %p217 = por %p215, %p216
      %p218 = scmp.ne.s32.totalorder %s210, %s212
      %p219 = scmp.eq.s32.totalorder %s29, 3
      %p220 = por %p218, %p219
      %p221 = scmp.ne.s32.totalorder %s212, %s213
      %p222 = scmp.eq.s32.totalorder %s29, 0
      %p223 = por %p221, %p222
      %p224 = scmp.ne.s32.totalorder %s212, %s213
      %p225 = scmp.eq.s32.totalorder %s30, 3
      %p226 = por %p224, %p225
      %p228 = scmp.ne.s32.totalorder %s213, %s227
      %p229 = scmp.eq.s32.totalorder %s30, 0
      %p230 = por %p228, %p229
      %s232 = sadd.s32 %s231, 1
      %p235 = scmp.eq.s32.totalorder %s24, 3
      %p236 = scmp.ne.s32.totalorder %s231, %s233
      %p237 = scmp.eq.s32.totalorder %s24, 0
      %p238 = por %p236, %p237
      %p239 = scmp.ne.s32.totalorder %s231, %s233
      %p240 = scmp.eq.s32.totalorder %s29, 3
      %p241 = por %p239, %p240
      %p242 = scmp.ne.s32.totalorder %s233, %s234
      %p243 = scmp.eq.s32.totalorder %s29, 0
      %p244 = por %p242, %p243
      %p245 = scmp.ne.s32.totalorder %s233, %s234
      %p246 = scmp.eq.s32.totalorder %s30, 3
      %p247 = por %p245, %p246
      %p249 = scmp.ne.s32.totalorder %s234, %s248
      %p250 = scmp.eq.s32.totalorder %s30, 0
      %p251 = por %p249, %p250
      %s252 = ssub.s32 %s24, %s31
      %p253 = scmp.eq.s32.totalorder %s252, 0
      %s255 = sadd.s32 %s254, 1
      %s256 = scalar_select %p253, %s254, %s255
      %p259 = pneg %p253
      %p260 = scmp.eq.s32.totalorder %s24, 3
      %p261 = por %p259, %p260
      %p262 = scmp.ne.s32.totalorder %s254, %s257
      %p263 = scmp.eq.s32.totalorder %s24, 0
      %p264 = por %p262, %p263
      %p265 = scmp.ne.s32.totalorder %s254, %s257
      %p266 = scmp.eq.s32.totalorder %s29, 3
      %p267 = por %p265, %p266
      %p268 = scmp.ne.s32.totalorder %s257, %s258
      %p269 = scmp.eq.s32.totalorder %s29, 0
      %p270 = por %p268, %p269
      %p271 = scmp.ne.s32.totalorder %s257, %s258
      %p272 = scmp.eq.s32.totalorder %s30, 3
      %p273 = por %p271, %p272
      %p275 = scmp.ne.s32.totalorder %s258, %s274
      %p276 = scmp.eq.s32.totalorder %s30, 0
      %p277 = por %p275, %p276
      %s278 = ssub.s32 %s24, %s31
      %p279 = scmp.eq.s32.totalorder %s278, 0
      %s281 = sadd.s32 %s280, 1
      %s282 = scalar_select %p279, %s280, %s281
      %p285 = pneg %p279
      %p286 = scmp.eq.s32.totalorder %s24, 3
      %p287 = por %p285, %p286
      %p288 = scmp.ne.s32.totalorder %s280, %s283
      %p289 = scmp.eq.s32.totalorder %s24, 0
      %p290 = por %p288, %p289
      %p291 = scmp.ne.s32.totalorder %s280, %s283
      %p292 = scmp.eq.s32.totalorder %s29, 3
      %p293 = por %p291, %p292
      %p294 = scmp.ne.s32.totalorder %s283, %s284
      %p295 = scmp.eq.s32.totalorder %s29, 0
      %p296 = por %p294, %p295
      %p297 = scmp.ne.s32.totalorder %s283, %s284
      %p298 = scmp.eq.s32.totalorder %s30, 3
      %p299 = por %p297, %p298
      %p301 = scmp.ne.s32.totalorder %s284, %s300
      %p302 = scmp.eq.s32.totalorder %s30, 0
      %p303 = por %p301, %p302
      %p304 = scmp.le.s32.totalorder 1, %s24
      %p305 = scmp.lt.s32.totalorder %s24, 5
      %p306 = pnand %p304, %p305
      %p307 = pneg %p306
      // Predicated region
      $region9: #{tpu_custom_call.1} parent=5 // pred_check
        _
      $region10: #{tpu_custom_call.1} parent=5 // pred_check_branch
        %309 = sbr.rel (%p306) target = $region12
      $region11: #{tpu_custom_call.1} parent=5 // pred_region
        %s310 = ssub.s32 %s24, 1
        // Predicated region
        $region13: #{tpu_custom_call.1} parent=11 // pred_check
          %p311 = pneg %p97
        $region14: #{tpu_custom_call.1} parent=11 // pred_check_branch
          %313 = sbr.rel (%p311) target = $region16
        $region15: #{tpu_custom_call.1} parent=11 // pred_region
          _
        $region16: #{tpu_custom_call.1} parent=11 // pred_fallthru
          _
        // Predicated region
        $region17: #{tpu_custom_call.1} parent=11 // pred_check
          %p314 = pneg %p118
        $region18: #{tpu_custom_call.1} parent=11 // pred_check_branch
          %316 = sbr.rel (%p314) target = $region20
        $region19: #{tpu_custom_call.1} parent=11 // pred_region
          _
        $region20: #{tpu_custom_call.1} parent=11 // pred_fallthru
          _
        // Predicated region
        $region21: #{tpu_custom_call.1} parent=11 // pred_check
          %p317 = pneg %p139
        $region22: #{tpu_custom_call.1} parent=11 // pred_check_branch
          %319 = sbr.rel (%p317) target = $region24
        $region23: #{tpu_custom_call.1} parent=11 // pred_region
          _
        $region24: #{tpu_custom_call.1} parent=11 // pred_fallthru
          _
        // Predicated region
        $region25: #{tpu_custom_call.1} parent=11 // pred_check
          %p320 = pneg %p160
        $region26: #{tpu_custom_call.1} parent=11 // pred_check_branch
          %322 = sbr.rel (%p320) target = $region28
        $region27: #{tpu_custom_call.1} parent=11 // pred_region
          _
        $region28: #{tpu_custom_call.1} parent=11 // pred_fallthru
          _
        // Predicated region
        $region29: #{tpu_custom_call.1} parent=11 // pred_check
          %p323 = pneg %p181
        $region30: #{tpu_custom_call.1} parent=11 // pred_check_branch
          %325 = sbr.rel (%p323) target = $region32
        $region31: #{tpu_custom_call.1} parent=11 // pred_region
          _
        $region32: #{tpu_custom_call.1} parent=11 // pred_fallthru
          _
        // Predicated region
        $region33: #{tpu_custom_call.1} parent=11 // pred_check
          %p326 = pneg %p202
        $region34: #{tpu_custom_call.1} parent=11 // pred_check_branch
          %328 = sbr.rel (%p326) target = $region36
        $region35: #{tpu_custom_call.1} parent=11 // pred_region
          _
        $region36: #{tpu_custom_call.1} parent=11 // pred_fallthru
          _
        // Predicated region
        $region37: #{tpu_custom_call.1} parent=11 // pred_check
          %p329 = pneg %p223
        $region38: #{tpu_custom_call.1} parent=11 // pred_check_branch
          %331 = sbr.rel (%p329) target = $region40
        $region39: #{tpu_custom_call.1} parent=11 // pred_region
          _
        $region40: #{tpu_custom_call.1} parent=11 // pred_fallthru
          _
        // Predicated region
        $region41: #{tpu_custom_call.1} parent=11 // pred_check
          %p332 = pneg %p244
        $region42: #{tpu_custom_call.1} parent=11 // pred_check_branch
          %334 = sbr.rel (%p332) target = $region44
        $region43: #{tpu_custom_call.1} parent=11 // pred_region
          _
        $region44: #{tpu_custom_call.1} parent=11 // pred_fallthru
          _
      $region12: #{tpu_custom_call.1} parent=5 // pred_fallthru
        _
      %p335 = scmp.lt.s32.totalorder %s24, 4
      // Predicated region
      $region45: #{tpu_custom_call.1} parent=5 // pred_check
        %p336 = pneg %p335
      $region46: #{tpu_custom_call.1} parent=5 // pred_check_branch
        %338 = sbr.rel (%p336) target = $region48
      $region47: #{tpu_custom_call.1} parent=5 // pred_region
        // Predicated region
        $region49: #{tpu_custom_call.1} parent=47 // pred_check
          %p339 = pneg %p44
        $region50: #{tpu_custom_call.1} parent=47 // pred_check_branch
          %341 = sbr.rel (%p339) target = $region52
        $region51: #{tpu_custom_call.1} parent=47 // pred_region
          %s342 = smul.u32 2, %s24
          %p343 = scmp.lt.s32.totalorder %s342, 7
          %s344 = scalar_select %p343, %s342, 7
          %s345 = smul.addr %s344, 8
          %s346 = scalar_lea.vmem %s0, %s345
          %s347 = smul.u32 2, %s24
        $region52: #{tpu_custom_call.1} parent=47 // pred_fallthru
          _
        // Predicated region
        $region53: #{tpu_custom_call.1} parent=47 // pred_check
          %p348 = pneg %p70
        $region54: #{tpu_custom_call.1} parent=47 // pred_check_branch
          %350 = sbr.rel (%p348) target = $region56
        $region55: #{tpu_custom_call.1} parent=47 // pred_region
          %s351 = smul.u32 2, %s24
          %p352 = scmp.lt.s32.totalorder %s351, 7
          %s353 = scalar_select %p352, %s351, 7
          %s354 = smul.addr %s353, 8
          %s355 = scalar_lea.vmem %s1, %s354
          %s356 = smul.u32 2, %s24
        $region56: #{tpu_custom_call.1} parent=47 // pred_fallthru
          _
      $region48: #{tpu_custom_call.1} parent=5 // pred_fallthru
        _
      %p357 = scmp.le.s32.totalorder 1, %s24
      %p358 = scmp.lt.s32.totalorder %s24, 5
      %p359 = pnand %p357, %p358
      %p360 = pneg %p359
      // Predicated region
      $region57: #{tpu_custom_call.1} parent=5 // pred_check
        _
      $region58: #{tpu_custom_call.1} parent=5 // pred_check_branch
        %362 = sbr.rel (%p359) target = $region60
      $region59: #{tpu_custom_call.1} parent=5 // pred_region
        %s363 = ssub.s32 %s24, 1
        %s364 = smul.u32 2, %s29
        %p365 = scmp.lt.s32.totalorder %s364, 7
        %s366 = scalar_select %p365, %s364, 7
        %s367 = smul.addr %s366, 8
        %s368 = scalar_lea.vmem %s0, %s367
        %p369 = pneg %p50
        %p370 = pneg %p47
        %s371 = smul.u32 2, %s29
        %p372 = scmp.lt.s32.totalorder %s371, 7
        %s373 = scalar_select %p372, %s371, 7
        %s374 = smul.addr %s373, 8
        %s375 = scalar_lea.vmem %s1, %s374
        %p376 = pneg %p76
        %p377 = pneg %p73
        %p378 = pneg %p97
        %p379 = pneg %p94
        %p380 = pneg %p118
        %p381 = pneg %p115
        %p382 = pneg %p139
        %p383 = pneg %p136
        %p384 = pneg %p160
        %p385 = pneg %p157
        %p386 = pneg %p181
        %p387 = pneg %p178
        %p388 = pneg %p202
        %p389 = pneg %p199
        %p390 = pneg %p223
        %p391 = pneg %p220
        %p392 = pneg %p244
        %p393 = pneg %p241
        %p394 = pneg %p270
        %p395 = pneg %p267
        %s396 = sand.u32 %s257, 1
        %s397 = scalar_lea.sflag [#allocation3], %s396
        %s398 = sand.u32 %s257, 1
        %s399 = smul.addr %s398, 16
        %s400 = scalar_lea.vmem [#allocation2], %s399
        %p401 = pneg %p296
        %p402 = pneg %p293
        %s403 = sand.u32 %s283, 1
        %s404 = scalar_lea.sflag [#allocation5], %s403
        %s405 = sand.u32 %s283, 1
        %s406 = smul.addr %s405, 32
        %s407 = scalar_lea.vmem [#allocation4], %s406
        %s408 = smul.u32 2, %s29
        %p409 = scmp.lt.s32.totalorder %s408, 7
        %s410 = scalar_select %p409, %s408, 7
        %s411 = smul.addr %s410, 8
        %s412 = scalar_lea.vmem %s0, %s411
        %s413 = smul.u32 2, %s29
        %s414 = smul.u32 2, %s29
        %p415 = scmp.lt.s32.totalorder %s414, 7
        %s416 = scalar_select %p415, %s414, 7
        %s417 = smul.addr %s416, 8
        %s418 = scalar_lea.vmem %s1, %s417
        %s419 = smul.u32 2, %s29
        %s420 = smul.u32 2, %s29
        %s421 = smul.u32 2, %s29
        %v422 = vld [vmem:[%s412] sm:$0xff]
        %v423 = vld [vmem:[%s412 + $0x8] sm:$0xff]
        %v424 = vld [vmem:[%s2] sm:$0xff]
        %v425 = vld [vmem:[%s2 + $0x8] sm:$0xff]
        %v426 = vld [vmem:[%s2 + $0x10] sm:$0xff]
        %v427 = vld [vmem:[%s2 + $0x18] sm:$0xff]
        %v428 = vld [vmem:[%s3] sm:$0x1]
        %v430 = vlaneseq
        %v431 = vshrl.u32 %v430, 7
        %v432 = vsub.s32 0, %v431
        %v433 = vrot.slane %v428, %v432
        %vm435 = vcmask 261120
        %v437 = vsel %vm435, %v422, 0
        %v440 = vsel %vm435, %v423, 0
        %442 = vmatprep.subr.mxu0 0.0
        %443 = vmatpush1.msra.mxu0 0.0
        %444 = vmatprep.subr.mxu0 0.0
        %445 = vmatpush1.msra.mxu0 0.0
        %446 = vmatprep.subr.mxu0 0.0
        %447 = vmatpush1.msra.mxu0 0.0
        %448 = vmatprep.subr.mxu0 0.0
        %449 = vmatpush1.msra.mxu0 0.0
        %450 = vmatprep.subr.mxu0 0.0
        %451 = vmatpush1.msra.mxu0 0.0
        %452 = vmatprep.subr.mxu0 0.0
        %453 = vmatpush1.msra.mxu0 0.0
        %454 = vmatprep.subr.mxu0 0.0
        %455 = vmatpush1.msra.mxu0 0.0
        %456 = vmatprep.subr.mxu0 0.0
        %457 = vmatpush1.msra.mxu0 0.0
        %458 = vmatprep.subr.mxu0 0.0
        %459 = vmatpush1.msra.mxu0 0.0
        %460 = vmatprep.subr.mxu0 0.0
        %461 = vmatpush1.msra.mxu0 0.0
        %462 = vmatprep.subr.mxu0 0.0
        %463 = vmatpush1.msra.mxu0 0.0
        %464 = vmatprep.subr.mxu0 0.0
        %465 = vmatpush1.msra.mxu0 0.0
        %466 = vmatprep.subr.mxu0 0.0
        %467 = vmatpush1.msra.mxu0 %v427
        %468 = vmatprep.subr.mxu0 0.0
        %469 = vmatpush1.msra.mxu0 %v426
        %470 = vmatprep.subr.mxu0 0.0
        %471 = vmatpush1.msra.mxu0 %v425
        %472 = vmatprep.subr.mxu0 0.0
        %473 = vmatpush1.msra.mxu0 %v424
        %474 = vmatprep.subr.mxu0 0.0
        %475 = vmatpush2.msra.mxu0 0.0
        %476 = vmatprep.subr.mxu0 0.0
        %477 = vmatpush2.msra.mxu0 0.0
        %478 = vmatprep.subr.mxu0 0.0
        %479 = vmatpush2.msra.mxu0 0.0
        %480 = vmatprep.subr.mxu0 0.0
        %481 = vmatpush2.msra.mxu0 0.0
        %482 = vmatprep.subr.mxu0 0.0
        %483 = vmatpush2.msra.mxu0 0.0
        %484 = vmatprep.subr.mxu0 0.0
        %485 = vmatpush2.msra.mxu0 0.0
        %486 = vmatprep.subr.mxu0 0.0
        %487 = vmatpush2.msra.mxu0 0.0
        %488 = vmatprep.subr.mxu0 0.0
        %489 = vmatpush2.msra.mxu0 0.0
        %490 = vmatprep.subr.mxu0 0.0
        %491 = vmatpush2.msra.mxu0 0.0
        %492 = vmatprep.subr.mxu0 0.0
        %493 = vmatpush2.msra.mxu0 0.0
        %494 = vmatprep.subr.mxu0 0.0
        %495 = vmatpush2.msra.mxu0 0.0
        %496 = vmatprep.subr.mxu0 0.0
        %497 = vmatpush2.msra.mxu0 0.0
        %498 = vmatprep.subr.mxu0 0.0
        %499 = vmatpush2.msra.mxu0 0.0
        %500 = vmatprep.subr.mxu0 0.0
        %501 = vmatpush2.msra.mxu0 0.0
        %502 = vmatprep.subr.mxu0 0.0
        %503 = vmatpush2.msra.mxu0 0.0
        %504 = vmatprep.subr.mxu0 0.0
        %505 = vmatpush2.msra.mxu0 0.0
        %506 = vmatprep.mubr.f32.mxu0 0.0
        %507 = vmatmul.mubr.f32.gmra.mxu0 %v437
        %v508 = vpop.f32.mrf.mxu0
        %v509 = vadd.f32 %v433, %v508
        %v510 = vpop.f32.mrf.mxu0
        %511 = vmatprep.mubr.f32.mxu0 0.0
        %512 = vmatmul.mubr.f32.gmra.mxu0 %v440
        %v513 = vpop.f32.mrf.mxu0
        %v514 = vadd.f32 %v433, %v513
        %v515 = vpop.f32.mrf.mxu0
        %516 = vdwg.mxu0
        %v517 = vmax.f32 %v509, 0.0
        %v518 = vmax.f32 %v514, 0.0
        %v519 = vld [vmem:[%s4] sm:$0xff]
        %v520 = vld [vmem:[%s4 + $0x8] sm:$0xff]
        %v521 = vld [vmem:[%s4 + $0x10] sm:$0xff]
        %v522 = vld [vmem:[%s4 + $0x18] sm:$0xff]
        %v523 = vld [vmem:[%s4 + $0x20] sm:$0xff]
        %v524 = vld [vmem:[%s4 + $0x28] sm:$0xff]
        %v525 = vld [vmem:[%s4 + $0x30] sm:$0xff]
        %v526 = vld [vmem:[%s4 + $0x38] sm:$0xff]
        %v527 = vld [vmem:[%s5] sm:$0x3]
        %v529 = vlaneseq
        %v530 = vshrl.u32 %v529, 7
        %v531 = vsub.s32 0, %v530
        %v532 = vrot.slane %v527, %v531
        %v533 = vlaneseq
        %v534 = vshrl.u32 %v533, 7
        %v535 = vsub.s32 1, %v534
        %v536 = vrot.slane %v527, %v535
        %v540 = vsel %vm435, %v517, 0
        %v543 = vsel %vm435, %v518, 0
        %545 = vmatprep.subr.mxu0 0.0
        %546 = vmatpush1.msra.mxu0 0.0
        %547 = vmatprep.subr.mxu0 0.0
        %548 = vmatpush1.msra.mxu0 0.0
        %549 = vmatprep.subr.mxu0 0.0
        %550 = vmatpush1.msra.mxu0 0.0
        %551 = vmatprep.subr.mxu0 0.0
        %552 = vmatpush1.msra.mxu0 0.0
        %553 = vmatprep.subr.mxu0 0.0
        %554 = vmatpush1.msra.mxu0 0.0
        %555 = vmatprep.subr.mxu0 0.0
        %556 = vmatpush1.msra.mxu0 0.0
        %557 = vmatprep.subr.mxu0 0.0
        %558 = vmatpush1.msra.mxu0 0.0
        %559 = vmatprep.subr.mxu0 0.0
        %560 = vmatpush1.msra.mxu0 0.0
        %561 = vmatprep.subr.mxu0 0.0
        %562 = vmatpush1.msra.mxu0 0.0
        %563 = vmatprep.subr.mxu0 0.0
        %564 = vmatpush1.msra.mxu0 0.0
        %565 = vmatprep.subr.mxu0 0.0
        %566 = vmatpush1.msra.mxu0 0.0
        %567 = vmatprep.subr.mxu0 0.0
        %568 = vmatpush1.msra.mxu0 0.0
        %569 = vmatprep.subr.mxu0 %v526
        %570 = vmatpush1.msra.mxu0 %v525
        %571 = vmatprep.subr.mxu0 %v524
        %572 = vmatpush1.msra.mxu0 %v523
        %573 = vmatprep.subr.mxu0 %v522
        %574 = vmatpush1.msra.mxu0 %v521
        %575 = vmatprep.subr.mxu0 %v520
        %576 = vmatpush1.msra.mxu0 %v519
        %577 = vmatprep.subr.mxu0 0.0
        %578 = vmatpush2.msra.mxu0 0.0
        %579 = vmatprep.subr.mxu0 0.0
        %580 = vmatpush2.msra.mxu0 0.0
        %581 = vmatprep.subr.mxu0 0.0
        %582 = vmatpush2.msra.mxu0 0.0
        %583 = vmatprep.subr.mxu0 0.0
        %584 = vmatpush2.msra.mxu0 0.0
        %585 = vmatprep.subr.mxu0 0.0
        %586 = vmatpush2.msra.mxu0 0.0
        %587 = vmatprep.subr.mxu0 0.0
        %588 = vmatpush2.msra.mxu0 0.0
        %589 = vmatprep.subr.mxu0 0.0
        %590 = vmatpush2.msra.mxu0 0.0
        %591 = vmatprep.subr.mxu0 0.0
        %592 = vmatpush2.msra.mxu0 0.0
        %593 = vmatprep.subr.mxu0 0.0
        %594 = vmatpush2.msra.mxu0 0.0
        %595 = vmatprep.subr.mxu0 0.0
        %596 = vmatpush2.msra.mxu0 0.0
        %597 = vmatprep.subr.mxu0 0.0
        %598 = vmatpush2.msra.mxu0 0.0
        %599 = vmatprep.subr.mxu0 0.0
        %600 = vmatpush2.msra.mxu0 0.0
        %601 = vmatprep.subr.mxu0 0.0
        %602 = vmatpush2.msra.mxu0 0.0
        %603 = vmatprep.subr.mxu0 0.0
        %604 = vmatpush2.msra.mxu0 0.0
        %605 = vmatprep.subr.mxu0 0.0
        %606 = vmatpush2.msra.mxu0 0.0
        %607 = vmatprep.subr.mxu0 0.0
        %608 = vmatpush2.msra.mxu0 0.0
        %609 = vmatprep.mubr.f32.mxu0 0.0
        %610 = vmatmul.mubr.f32.gmra.mxu0 %v540
        %v611 = vpop.f32.mrf.mxu0
        %v612 = vadd.f32 %v532, %v611
        %v613 = vpop.f32.mrf.mxu0
        %v614 = vadd.f32 %v536, %v613
        %615 = vmatprep.mubr.f32.mxu0 0.0
        %616 = vmatmul.mubr.f32.gmra.mxu0 %v543
        %v617 = vpop.f32.mrf.mxu0
        %v618 = vadd.f32 %v532, %v617
        %v619 = vpop.f32.mrf.mxu0
        %v620 = vadd.f32 %v536, %v619
        %621 = vdwg.mxu0
        %v622 = vld [vmem:[%s418] sm:$0xff]
        %v623 = vld [vmem:[%s418 + $0x8] sm:$0xff]
        %v624 = vmul.f32 %v614, 0.5
        %v625 = vmul.f32 %v620, 0.5
        %v626 = vmul.f32 %v624, 1.442695
        %v627 = vpow.pop %v626
        %v628 = vmul.f32 %v625, 1.442695
        %v629 = vpow.pop %v628
        %v630 = vmul.f32 %v622, %v627
        %v631 = vmul.f32 %v623, %v629
        %v632 = vadd.f32 %v612, %v630
        %v633 = vadd.f32 %v618, %v631
        %v634 = vld [vmem:[%s6] sm:$0xff]
        %v635 = vld [vmem:[%s6 + $0x8] sm:$0xff]
        %v636 = vld [vmem:[%s6 + $0x10] sm:$0xff]
        %v637 = vld [vmem:[%s6 + $0x18] sm:$0xff]
        %v638 = vld [vmem:[%s6 + $0x20] sm:$0xff]
        %v639 = vld [vmem:[%s6 + $0x28] sm:$0xff]
        %v640 = vld [vmem:[%s6 + $0x30] sm:$0xff]
        %v641 = vld [vmem:[%s6 + $0x38] sm:$0xff]
        %v642 = vld [vmem:[%s6 + $0x40] sm:$0xff]
        %v643 = vld [vmem:[%s6 + $0x48] sm:$0xff]
        %v644 = vld [vmem:[%s6 + $0x50] sm:$0xff]
        %v645 = vld [vmem:[%s6 + $0x58] sm:$0xff]
        %v646 = vld [vmem:[%s6 + $0x60] sm:$0xff]
        %v647 = vld [vmem:[%s6 + $0x68] sm:$0xff]
        %v648 = vld [vmem:[%s6 + $0x70] sm:$0xff]
        %v649 = vld [vmem:[%s6 + $0x78] sm:$0xff]
        %v650 = vld [vmem:[%s7] sm:$0x1]
        %v652 = vlaneseq
        %v653 = vshrl.u32 %v652, 7
        %v654 = vsub.s32 0, %v653
        %v655 = vrot.slane %v650, %v654
        %657 = vmatprep.subr.mxu0 0.0
        %658 = vmatpush1.msra.mxu0 %v649
        %659 = vmatprep.subr.mxu0 0.0
        %660 = vmatpush1.msra.mxu0 %v648
        %661 = vmatprep.subr.mxu0 0.0
        %662 = vmatpush1.msra.mxu0 %v647
        %663 = vmatprep.subr.mxu0 0.0
        %664 = vmatpush1.msra.mxu0 %v646
        %665 = vmatprep.subr.mxu0 0.0
        %666 = vmatpush1.msra.mxu0 %v645
        %667 = vmatprep.subr.mxu0 0.0
        %668 = vmatpush1.msra.mxu0 %v644
        %669 = vmatprep.subr.mxu0 0.0
        %670 = vmatpush1.msra.mxu0 %v643
        %671 = vmatprep.subr.mxu0 0.0
        %672 = vmatpush1.msra.mxu0 %v642
        %673 = vmatprep.subr.mxu0 0.0
        %674 = vmatpush1.msra.mxu0 %v641
        %675 = vmatprep.subr.mxu0 0.0
        %676 = vmatpush1.msra.mxu0 %v640
        %677 = vmatprep.subr.mxu0 0.0
        %678 = vmatpush1.msra.mxu0 %v639
        %679 = vmatprep.subr.mxu0 0.0
        %680 = vmatpush1.msra.mxu0 %v638
        %681 = vmatprep.subr.mxu0 0.0
        %682 = vmatpush1.msra.mxu0 %v637
        %683 = vmatprep.subr.mxu0 0.0
        %684 = vmatpush1.msra.mxu0 %v636
        %685 = vmatprep.subr.mxu0 0.0
        %686 = vmatpush1.msra.mxu0 %v635
        %687 = vmatprep.subr.mxu0 0.0
        %688 = vmatpush1.msra.mxu0 %v634
        %689 = vmatprep.subr.mxu0 0.0
        %690 = vmatpush2.msra.mxu0 0.0
        %691 = vmatprep.subr.mxu0 0.0
        %692 = vmatpush2.msra.mxu0 0.0
        %693 = vmatprep.subr.mxu0 0.0
        %694 = vmatpush2.msra.mxu0 0.0
        %695 = vmatprep.subr.mxu0 0.0
        %696 = vmatpush2.msra.mxu0 0.0
        %697 = vmatprep.subr.mxu0 0.0
        %698 = vmatpush2.msra.mxu0 0.0
        %699 = vmatprep.subr.mxu0 0.0
        %700 = vmatpush2.msra.mxu0 0.0
        %701 = vmatprep.subr.mxu0 0.0
        %702 = vmatpush2.msra.mxu0 0.0
        %703 = vmatprep.subr.mxu0 0.0
        %704 = vmatpush2.msra.mxu0 0.0
        %705 = vmatprep.subr.mxu0 0.0
        %706 = vmatpush2.msra.mxu0 0.0
        %707 = vmatprep.subr.mxu0 0.0
        %708 = vmatpush2.msra.mxu0 0.0
        %709 = vmatprep.subr.mxu0 0.0
        %710 = vmatpush2.msra.mxu0 0.0
        %711 = vmatprep.subr.mxu0 0.0
        %712 = vmatpush2.msra.mxu0 0.0
        %713 = vmatprep.subr.mxu0 0.0
        %714 = vmatpush2.msra.mxu0 0.0
        %715 = vmatprep.subr.mxu0 0.0
        %716 = vmatpush2.msra.mxu0 0.0
        %717 = vmatprep.subr.mxu0 0.0
        %718 = vmatpush2.msra.mxu0 0.0
        %719 = vmatprep.subr.mxu0 0.0
        %720 = vmatpush2.msra.mxu0 0.0
        %721 = vmatprep.mubr.f32.mxu0 0.0
        %722 = vmatmul.mubr.f32.gmra.mxu0 %v632
        %v723 = vpop.f32.mrf.mxu0
        %v724 = vadd.f32 %v655, %v723
        %v725 = vpop.f32.mrf.mxu0
        %726 = vmatprep.mubr.f32.mxu0 0.0
        %727 = vmatmul.mubr.f32.gmra.mxu0 %v633
        %v728 = vpop.f32.mrf.mxu0
        %v729 = vadd.f32 %v655, %v728
        %v730 = vpop.f32.mrf.mxu0
        %731 = vdwg.mxu0
        %v732 = vmax.f32 %v724, 0.0
        %v733 = vmax.f32 %v729, 0.0
        %v734 = vld [vmem:[%s8] sm:$0xff]
        %v735 = vld [vmem:[%s8 + $0x8] sm:$0xff]
        %v736 = vld [vmem:[%s8 + $0x10] sm:$0xff]
        %v737 = vld [vmem:[%s8 + $0x18] sm:$0xff]
        %v738 = vld [vmem:[%s9] sm:$0x1]
        %v740 = vlaneseq
        %v741 = vshrl.u32 %v740, 7
        %v742 = vsub.s32 0, %v741
        %v743 = vrot.slane %v738, %v742
        %v746 = vsel %vm435, %v732, 0
        %v749 = vsel %vm435, %v733, 0
        %751 = vmatprep.subr.mxu0 0.0
        %752 = vmatpush1.msra.mxu0 0.0
        %753 = vmatprep.subr.mxu0 0.0
        %754 = vmatpush1.msra.mxu0 0.0
        %755 = vmatprep.subr.mxu0 0.0
        %756 = vmatpush1.msra.mxu0 0.0
        %757 = vmatprep.subr.mxu0 0.0
        %758 = vmatpush1.msra.mxu0 0.0
        %759 = vmatprep.subr.mxu0 0.0
        %760 = vmatpush1.msra.mxu0 0.0
        %761 = vmatprep.subr.mxu0 0.0
        %762 = vmatpush1.msra.mxu0 0.0
        %763 = vmatprep.subr.mxu0 0.0
        %764 = vmatpush1.msra.mxu0 0.0
        %765 = vmatprep.subr.mxu0 0.0
        %766 = vmatpush1.msra.mxu0 0.0
        %767 = vmatprep.subr.mxu0 0.0
        %768 = vmatpush1.msra.mxu0 0.0
        %769 = vmatprep.subr.mxu0 0.0
        %770 = vmatpush1.msra.mxu0 0.0
        %771 = vmatprep.subr.mxu0 0.0
        %772 = vmatpush1.msra.mxu0 0.0
        %773 = vmatprep.subr.mxu0 0.0
        %774 = vmatpush1.msra.mxu0 0.0
        %775 = vmatprep.subr.mxu0 0.0
        %776 = vmatpush1.msra.mxu0 %v737
        %777 = vmatprep.subr.mxu0 0.0
        %778 = vmatpush1.msra.mxu0 %v736
        %779 = vmatprep.subr.mxu0 0.0
        %780 = vmatpush1.msra.mxu0 %v735
        %781 = vmatprep.subr.mxu0 0.0
        %782 = vmatpush1.msra.mxu0 %v734
        %783 = vmatprep.subr.mxu0 0.0
        %784 = vmatpush2.msra.mxu0 0.0
        %785 = vmatprep.subr.mxu0 0.0
        %786 = vmatpush2.msra.mxu0 0.0
        %787 = vmatprep.subr.mxu0 0.0
        %788 = vmatpush2.msra.mxu0 0.0
        %789 = vmatprep.subr.mxu0 0.0
        %790 = vmatpush2.msra.mxu0 0.0
        %791 = vmatprep.subr.mxu0 0.0
        %792 = vmatpush2.msra.mxu0 0.0
        %793 = vmatprep.subr.mxu0 0.0
        %794 = vmatpush2.msra.mxu0 0.0
        %795 = vmatprep.subr.mxu0 0.0
        %796 = vmatpush2.msra.mxu0 0.0
        %797 = vmatprep.subr.mxu0 0.0
        %798 = vmatpush2.msra.mxu0 0.0
        %799 = vmatprep.subr.mxu0 0.0
        %800 = vmatpush2.msra.mxu0 0.0
        %801 = vmatprep.subr.mxu0 0.0
        %802 = vmatpush2.msra.mxu0 0.0
        %803 = vmatprep.subr.mxu0 0.0
        %804 = vmatpush2.msra.mxu0 0.0
        %805 = vmatprep.subr.mxu0 0.0
        %806 = vmatpush2.msra.mxu0 0.0
        %807 = vmatprep.subr.mxu0 0.0
        %808 = vmatpush2.msra.mxu0 0.0
        %809 = vmatprep.subr.mxu0 0.0
        %810 = vmatpush2.msra.mxu0 0.0
        %811 = vmatprep.subr.mxu0 0.0
        %812 = vmatpush2.msra.mxu0 0.0
        %813 = vmatprep.subr.mxu0 0.0
        %814 = vmatpush2.msra.mxu0 0.0
        %815 = vmatprep.mubr.f32.mxu0 0.0
        %816 = vmatmul.mubr.f32.gmra.mxu0 %v746
        %v817 = vpop.f32.mrf.mxu0
        %v818 = vadd.f32 %v743, %v817
        %v819 = vpop.f32.mrf.mxu0
        %820 = vmatprep.mubr.f32.mxu0 0.0
        %821 = vmatmul.mubr.f32.gmra.mxu0 %v749
        %v822 = vpop.f32.mrf.mxu0
        %v823 = vadd.f32 %v743, %v822
        %v824 = vpop.f32.mrf.mxu0
        %825 = vdwg.mxu0
        %826 = vst [vmem:[%s400] sm:$0xff] %v818
        %827 = vst [vmem:[%s400 + $0x8] sm:$0xff] %v823
        %828 = vst [vmem:[%s407] sm:$0xff] %v612
        %829 = vst [vmem:[%s407 + $0x8] sm:$0xff] %v614
        %830 = vst [vmem:[%s407 + $0x10] sm:$0xff] %v618
        %831 = vst [vmem:[%s407 + $0x18] sm:$0xff] %v620
        %s832 = sand.u32 %s257, 1
        %s833 = scalar_lea.sflag [#allocation3], %s832
        %s834 = sand.u32 %s257, 1
        %s835 = smul.addr %s834, 16
        %s836 = scalar_lea.vmem [#allocation2], %s835
        %s837 = sand.u32 %s283, 1
        %s838 = scalar_lea.sflag [#allocation5], %s837
        %s839 = sand.u32 %s283, 1
        %s840 = smul.addr %s839, 32
        %s841 = scalar_lea.vmem [#allocation4], %s840
        // Predicated region
        $region61: #{tpu_custom_call.1} parent=59 // pred_check
          %p842 = pneg %p267
        $region62: #{tpu_custom_call.1} parent=59 // pred_check_branch
          %844 = sbr.rel (%p842) target = $region64
        $region63: #{tpu_custom_call.1} parent=59 // pred_region
          %s845 = smul.u32 2, %s29
          %s847 = ssub.s32 256, 256
          %848 = vsyncadd %s833, %s847
          %s849 = smul.addr %s845, 128
          %s850 = scalar_lea.hbm %s10, %s849
          %s851 = sshll.u32 %s836, 4
          %s852 = int_to_ptr.vmem [resolvable:$true] %s851
          %857 = dma.vmem_to_hbm [thread:$0]  %s852, 256, %s850, %s833, 128, 128, 8
        $region64: #{tpu_custom_call.1} parent=59 // pred_fallthru
          _
        // Predicated region
        $region65: #{tpu_custom_call.1} parent=59 // pred_check
          %p858 = pneg %p293
        $region66: #{tpu_custom_call.1} parent=59 // pred_check_branch
          %860 = sbr.rel (%p858) target = $region68
        $region67: #{tpu_custom_call.1} parent=59 // pred_region
          %s861 = smul.u32 2, %s29
          %s863 = ssub.s32 512, 512
          %864 = vsyncadd %s838, %s863
          %s865 = smul.addr %s861, 2
          %s866 = smul.addr %s865, 128
          %s867 = scalar_lea.hbm %s11, %s866
          %s868 = sshll.u32 %s841, 4
          %s869 = int_to_ptr.vmem [resolvable:$true] %s868
          %874 = dma.vmem_to_hbm [thread:$0]  %s869, 512, %s867, %s838, 256, 256, 16
        $region68: #{tpu_custom_call.1} parent=59 // pred_fallthru
          _
      $region60: #{tpu_custom_call.1} parent=5 // pred_fallthru
        _
      %p875 = scmp.le.s32.totalorder 2, %s24
      // Predicated region
      $region69: #{tpu_custom_call.1} parent=5 // pred_check
        %p876 = pneg %p875
      $region70: #{tpu_custom_call.1} parent=5 // pred_check_branch
        %878 = sbr.rel (%p876) target = $region72
      $region71: #{tpu_custom_call.1} parent=5 // pred_region
        %s879 = ssub.s32 %s24, 2
        // Predicated region
        $region73: #{tpu_custom_call.1} parent=71 // pred_check
          %p880 = pneg %p273
        $region74: #{tpu_custom_call.1} parent=71 // pred_check_branch
          %882 = sbr.rel (%p880) target = $region76
        $region75: #{tpu_custom_call.1} parent=71 // pred_region
          %s883 = sand.u32 %s258, 1
          %s884 = scalar_lea.sflag [#allocation3], %s883
          %s885 = sand.u32 %s258, 1
          %s886 = smul.addr %s885, 16
          %s887 = scalar_lea.vmem [#allocation2], %s886
          %888 = dma.done %s884, 256
        $region76: #{tpu_custom_call.1} parent=71 // pred_fallthru
          _
        // Predicated region
        $region77: #{tpu_custom_call.1} parent=71 // pred_check
          %p889 = pneg %p299
        $region78: #{tpu_custom_call.1} parent=71 // pred_check_branch
          %891 = sbr.rel (%p889) target = $region80
        $region79: #{tpu_custom_call.1} parent=71 // pred_region
          %s892 = sand.u32 %s284, 1
          %s893 = scalar_lea.sflag [#allocation5], %s892
          %s894 = sand.u32 %s284, 1
          %s895 = smul.addr %s894, 32
          %s896 = scalar_lea.vmem [#allocation4], %s895
          %897 = dma.done %s893, 512
        $region80: #{tpu_custom_call.1} parent=71 // pred_fallthru
          _
      $region72: #{tpu_custom_call.1} parent=5 // pred_fallthru
        _
    $region6: #{tpu_custom_call.1} parent=1 // loop_footer
      %s28 = sadd.s32 1, %s24
    $region7: #{tpu_custom_call.1} parent=1 // loop_footer_branch
      %23 = sbr.rel target = $region3
    $region8: #{tpu_custom_call.1} parent=1 // loop_exit
      _
    %898 = vsyncpa [#allocation3], 1
    %s899 = scalar_lea.sflag [#allocation3], 1
    %900 = vsyncpa %s899, 1
    %901 = vsyncpa [#allocation5], 1
    %s902 = scalar_lea.sflag [#allocation5], 1
    %903 = vsyncpa %s902, 1

</llo_original>
